<compile_context>
chip_gen: v6e
topology: v6e:2x2x1
jax: 0.10.0
libtpu: 0.0.40
codegen_flags: <defaults>
</compile_context>

<pallas_src>
import functools

import jax
import jax.numpy as jnp
from jax.experimental import pallas as pl
from jax.experimental.pallas import tpu as pltpu

LANE = 128  # TPU vreg lane width; feature dim is padded to a multiple of this.


def _round_up(v, m):
    return ((v + m - 1) // m) * m


def _full_spec(shape):
    # grid=() spec: one block covering the whole (VMEM-resident) array.
    return pl.BlockSpec(shape, lambda: (0,) * len(shape))


def _stable_softplus(x):
    # max(x,0) + log(1 + exp(-|x|)): never overflows, same two EUP transcendentals.
    return jnp.maximum(x, 0.0) + jnp.log(1.0 + jnp.exp(-jnp.abs(x)))


def _gcn2_compute(adj_b, x, w1_b, b1, w2_b, b2):
    """Two GCN layers; bf16 MXU inputs, f32 accumulation, f32 bias/activation."""
    bf16 = jnp.bfloat16
    agg1 = jnp.dot(adj_b, x.astype(bf16), preferred_element_type=jnp.float32)
    pre1 = jnp.dot(agg1.astype(bf16), w1_b, preferred_element_type=jnp.float32) + b1
    h1 = _stable_softplus(pre1)
    agg2 = jnp.dot(adj_b, h1.astype(bf16), preferred_element_type=jnp.float32)
    return jnp.dot(agg2.astype(bf16), w2_b, preferred_element_type=jnp.float32) + b2


def _gcn2_cost(n, hp, steps):
    flops = steps * (4 * n * n * hp + 4 * n * hp * hp)          # 4 matmuls / step
    transcendentals = steps * 2 * n * hp                         # exp + log per element
    bytes_accessed = (2 * n * n           # adj (bf16)
                      + 4 * n * hp        # x   (f32)
                      + 2 * 2 * hp * hp   # w1, w2 (bf16)
                      + 2 * 4 * hp        # b1, b2 (f32)
                      + 4 * n * hp)       # out (f32)
    return pl.CostEstimate(flops=flops, transcendentals=transcendentals,
                           bytes_accessed=bytes_accessed)


# --------------------------------------------------------------------------- kernels
def _gde_gcn_kernel(adj_ref, x_ref, w1_ref, b1_ref, w2_ref, b2_ref, o_ref):
    """Single ODE-func evaluation: y = GCN2(x)."""
    y = _gcn2_compute(adj_ref[...], x_ref[...], w1_ref[...], b1_ref[...],
                      w2_ref[...], b2_ref[...])
    o_ref[...] = y.astype(o_ref.dtype)


def _gde_euler_kernel(adj_ref, x0_ref, w1_ref, b1_ref, w2_ref, b2_ref, y_ref, *, dt):
    """Fused fixed-step Euler: the ODE state lives in y_ref across the step grid axis."""
    step = pl.program_id(0)

    @pl.when(step == 0)
    def _():
        y_ref[...] = x0_ref[...]

    x = y_ref[...]
    f = _gcn2_compute(adj_ref[...], x, w1_ref[...], b1_ref[...],
                      w2_ref[...], b2_ref[...])
    y_ref[...] = x + jnp.float32(dt) * f


# -------------------------------------------------------------------------- wrappers
@jax.jit
def gde_gcn_forward(adj_b, x, w1_b, b1_p, w2_b, b2_p):
    """One forward evaluation of the wrapped GCN.  x: (N, H) f32 -> (N, H) f32."""
    n, h = x.shape
    hp = w1_b.shape[0]
    x_p = jnp.pad(x.astype(jnp.float32), ((0, 0), (0, hp - h)))
    y_p = pl.pallas_call(
        _gde_gcn_kernel,
        out_shape=jax.ShapeDtypeStruct((n, hp), jnp.float32),
        grid=(),  # everything fits in VMEM at these sizes; single invocation
        in_specs=[
            _full_spec((n, n)),    # adj (bf16)
            _full_spec((n, hp)),   # x   (f32, lane-padded)
            _full_spec((hp, hp)),  # w1  (bf16)
            _full_spec((1, hp)),   # b1  (f32)
            _full_spec((hp, hp)),  # w2  (bf16)
            _full_spec((1, hp)),   # b2  (f32)
        ],
        out_specs=_full_spec((n, hp)),
        cost_estimate=_gcn2_cost(n, hp, 1),
    )(adj_b, x_p, w1_b, b1_p, w2_b, b2_p)
    return y_p[:, :h]


@functools.partial(jax.jit, static_argnames=("dt", "num_steps"))
def gde_euler_multistep(adj_b, x0, w1_b, b1_p, w2_b, b2_p, *, dt, num_steps):
    """num_steps explicit-Euler steps of dx/dt = GCN2(x) inside ONE pallas_call."""
    n, h = x0.shape
    hp = w1_b.shape[0]
    x_p = jnp.pad(x0.astype(jnp.float32), ((0, 0), (0, hp - h)))
    const2 = lambda s: (0, 0)  # constant index maps -> operands stay VMEM-resident
    y_p = pl.pallas_call(
        functools.partial(_gde_euler_kernel, dt=float(dt)),
        out_shape=jax.ShapeDtypeStruct((n, hp), jnp.float32),
        grid=(num_steps,),
        in_specs=[
            pl.BlockSpec((n, n), const2),
            pl.BlockSpec((n, hp), const2),
            pl.BlockSpec((hp, hp), const2),
            pl.BlockSpec((1, hp), const2),
            pl.BlockSpec((hp, hp), const2),
            pl.BlockSpec((1, hp), const2),
        ],
        out_specs=pl.BlockSpec((n, hp), const2),  # state block, resident across steps
        compiler_params=pltpu.CompilerParams(dimension_semantics=("arbitrary",)),
        cost_estimate=_gcn2_cost(n, hp, num_steps),
    )(adj_b, x_p, w1_b, b1_p, w2_b, b2_p)
    return y_p[:, :h]


class GDEFunc:
    """JAX/Pallas port of GDEFunc: forward(t, x) -> gnn(x); counts nfe.

    Note: the Python nfe counter only increments when __call__ runs eagerly;
    it is not visible inside jit/scan-wrapped ODE solvers.
    """

    def __init__(self, adj_hat, w1, b1, w2, b2):
        self.h = int(w1.shape[0])
        self.hp = _round_up(self.h, LANE)
        pad_w = lambda w: jnp.pad(
            w, ((0, self.hp - w.shape[0]), (0, self.hp - w.shape[1]))
        ).astype(jnp.bfloat16)
        pad_b = lambda b: jnp.pad(jnp.reshape(b, (1, -1)).astype(jnp.float32),
                                  ((0, 0), (0, self.hp - b.size)))
        self.w1_b, self.w2_b = pad_w(w1), pad_w(w2)
        self.b1_p, self.b2_p = pad_b(b1), pad_b(b2)
        self.set_graph(adj_hat)
        self.nfe = 0

    def set_graph(self, adj_hat):
        self.adj_b = adj_hat.astype(jnp.bfloat16)

    def __call__(self, t, x):
        del t  # unused, as in the PyTorch module
        self.nfe += 1
        return gde_gcn_forward(self.adj_b, x, self.w1_b, self.b1_p,
                               self.w2_b, self.b2_p)

    def integrate_euler(self, x0, dt, num_steps):
        """Amortized variant: whole fixed-step Euler solve in one kernel launch."""
        self.nfe += int(num_steps)
        return gde_euler_multistep(self.adj_b, x0, self.w1_b, self.b1_p,
                                   self.w2_b, self.b2_p,
                                   dt=float(dt), num_steps=int(num_steps))


# ----------------------------------------------------------------- references / demo
def _reference_gcn2(adj_b, x_p, w1_b, b1_p, w2_b, b2_p):
    """Pure-JAX mirror of _gcn2_compute (same bf16 rounding points, stable softplus)."""
    bf16 = jnp.bfloat16
    agg1 = jnp.dot(adj_b, x_p.astype(bf16), preferred_element_type=jnp.float32)
    pre1 = jnp.dot(agg1.astype(bf16), w1_b, preferred_element_type=jnp.float32) + b1_p
    h1 = jax.nn.softplus(pre1)
    agg2 = jnp.dot(adj_b, h1.astype(bf16), preferred_element_type=jnp.float32)
    return jnp.dot(agg2.astype(bf16), w2_b, preferred_element_type=jnp.float32) + b2_p


def _normalized_adjacency(key, n):
    """Random symmetric graph with self loops, symmetric degree normalization."""
    a = (jax.random.uniform(key, (n, n)) < 0.15).astype(jnp.float32)
    a = jnp.maximum(a, a.T)                       # symmetrize
    a = a + jnp.eye(n, dtype=jnp.float32)         # self loops
    deg = jnp.sum(a, axis=1)
    d_inv_sqrt = 1.0 / jnp.sqrt(deg)
    return a * d_inv_sqrt[:, None] * d_inv_sqrt[None, :]


if __name__ == "__main__":
    key = jax.random.PRNGKey(0)
    k_adj, k_x, k_w1, k_b1, k_w2, k_b2 = jax.random.split(key, 6)

    N, H = 64, 32  # nodes, hidden feature dim

    adj_hat = _normalized_adjacency(k_adj, N)
    x = jax.random.normal(k_x, (N, H), dtype=jnp.float32)

    scale = 1.0 / jnp.sqrt(jnp.float32(H))
    w1 = jax.random.normal(k_w1, (H, H), dtype=jnp.float32) * scale
    b1 = jax.random.normal(k_b1, (1, H), dtype=jnp.float32) * 0.01
    w2 = jax.random.normal(k_w2, (H, H), dtype=jnp.float32) * scale
    b2 = jax.random.normal(k_b2, (1, H), dtype=jnp.float32) * 0.01

    func = GDEFunc(adj_hat, w1, b1, w2, b2)
    t = jnp.float32(0.0)  # unused by forward, matches ODE-func signature

    # ---- single ODE-func evaluation (matches PyTorch forward(t, x) = gnn(x)) ----
    y = jax.block_until_ready(func(t, x))
    assert y.shape == (N, H)
    assert func.nfe == 1

    x_p = jnp.pad(x, ((0, 0), (0, func.hp - H)))
    y_ref = _reference_gcn2(func.adj_b, x_p, func.w1_b, func.b1_p,
                            func.w2_b, func.b2_p)[:, :H]
    assert jnp.allclose(y, y_ref, atol=1e-3, rtol=1e-3)

    # full-precision sanity check: bf16 MXU inputs preserve the GCN semantics
    h_f32 = jax.nn.softplus(adj_hat @ x @ w1 + b1)
    y_f32 = adj_hat @ h_f32 @ w2 + b2
    assert jnp.allclose(y, y_f32, atol=5e-2, rtol=5e-2)

    # ---- fused multi-step Euler solve (launch/DMA amortized across nfe) ----
    STEPS, DT = 8, 0.05
    y_ms = jax.block_until_ready(func.integrate_euler(x, DT, STEPS))
    assert y_ms.shape == (N, H)
    assert func.nfe == 1 + STEPS

    xk = x_p
    for _ in range(STEPS):
        xk = xk + DT * _reference_gcn2(func.adj_b, xk, func.w1_b, func.b1_p,
                                       func.w2_b, func.b2_p)
    assert jnp.allclose(y_ms, xk[:, :H], atol=1e-3, rtol=1e-3)

    print("KERNEL_OK")
</pallas_src>

<mosaic_0001>
module attributes {stable_mosaic.version = 11 : i64} {
  func.func @_gde_gcn_kernel(%arg0: memref<64x64xbf16, #tpu.memory_space<vmem>>, %arg1: memref<64x128xf32, #tpu.memory_space<vmem>>, %arg2: memref<128x128xbf16, #tpu.memory_space<vmem>>, %arg3: memref<1x128xf32, #tpu.memory_space<vmem>>, %arg4: memref<128x128xbf16, #tpu.memory_space<vmem>>, %arg5: memref<1x128xf32, #tpu.memory_space<vmem>>, %arg6: memref<64x128xf32, #tpu.memory_space<vmem>>) attributes {dimension_semantics = [], scalar_prefetch = 0 : i64, scratch_operands = 0 : i64, tpu.core_type = #tpu.core_type<tc>} {
    %c0 = arith.constant 0 : index
    %c0_0 = arith.constant 0 : index
    %0 = vector.load %arg0[%c0, %c0_0] : memref<64x64xbf16, #tpu.memory_space<vmem>>, vector<64x64xbf16>
    %c0_1 = arith.constant 0 : index
    %c0_2 = arith.constant 0 : index
    %1 = vector.load %arg1[%c0_1, %c0_2] : memref<64x128xf32, #tpu.memory_space<vmem>>, vector<64x128xf32>
    %c0_3 = arith.constant 0 : index
    %c0_4 = arith.constant 0 : index
    %2 = vector.load %arg2[%c0_3, %c0_4] : memref<128x128xbf16, #tpu.memory_space<vmem>>, vector<128x128xbf16>
    %c0_5 = arith.constant 0 : index
    %c0_6 = arith.constant 0 : index
    %3 = vector.load %arg3[%c0_5, %c0_6] : memref<1x128xf32, #tpu.memory_space<vmem>>, vector<1x128xf32>
    %c0_7 = arith.constant 0 : index
    %c0_8 = arith.constant 0 : index
    %4 = vector.load %arg4[%c0_7, %c0_8] : memref<128x128xbf16, #tpu.memory_space<vmem>>, vector<128x128xbf16>
    %c0_9 = arith.constant 0 : index
    %c0_10 = arith.constant 0 : index
    %5 = vector.load %arg5[%c0_9, %c0_10] : memref<1x128xf32, #tpu.memory_space<vmem>>, vector<1x128xf32>
    %6 = arith.truncf %1 : vector<64x128xf32> to vector<64x128xbf16>
    %cst = arith.constant dense<0.000000e+00> : vector<64x128xf32>
    %7 = tpu.matmul %0, %6, %cst {dimension_numbers = #tpu.dot_dimension_numbers<[1], [0], [0], [1], [0, 0, 1, 1], [], []>} : vector<64x64xbf16>, vector<64x128xbf16>, vector<64x128xf32> -> vector<64x128xf32>
    %8 = arith.truncf %7 : vector<64x128xf32> to vector<64x128xbf16>
    %cst_11 = arith.constant dense<0.000000e+00> : vector<64x128xf32>
    %9 = tpu.matmul %8, %2, %cst_11 {dimension_numbers = #tpu.dot_dimension_numbers<[1], [0], [0], [1], [0, 0, 1, 1], [], []>} : vector<64x128xbf16>, vector<128x128xbf16>, vector<64x128xf32> -> vector<64x128xf32>
    %10 = vector.broadcast %3 : vector<1x128xf32> to vector<64x128xf32>
    %11 = arith.addf %9, %10 : vector<64x128xf32>
    %cst_12 = arith.constant 0.000000e+00 : f32
    %12 = vector.broadcast %cst_12 : f32 to vector<64x128xf32>
    %13 = arith.maximumf %11, %12 : vector<64x128xf32>
    %14 = math.absf %11 : vector<64x128xf32>
    %cst_13 = arith.constant 0.000000e+00 : f32
    %15 = vector.broadcast %cst_13 : f32 to vector<64x128xf32>
    %16 = arith.subf %15, %14 : vector<64x128xf32>
    %17 = math.exp %16 : vector<64x128xf32>
    %cst_14 = arith.constant 1.000000e+00 : f32
    %18 = vector.broadcast %cst_14 : f32 to vector<64x128xf32>
    %19 = arith.addf %18, %17 : vector<64x128xf32>
    %20 = math.log %19 : vector<64x128xf32>
    %21 = arith.addf %13, %20 : vector<64x128xf32>
    %22 = arith.truncf %21 : vector<64x128xf32> to vector<64x128xbf16>
    %cst_15 = arith.constant dense<0.000000e+00> : vector<64x128xf32>
    %23 = tpu.matmul %0, %22, %cst_15 {dimension_numbers = #tpu.dot_dimension_numbers<[1], [0], [0], [1], [0, 0, 1, 1], [], []>} : vector<64x64xbf16>, vector<64x128xbf16>, vector<64x128xf32> -> vector<64x128xf32>
    %24 = arith.truncf %23 : vector<64x128xf32> to vector<64x128xbf16>
    %cst_16 = arith.constant dense<0.000000e+00> : vector<64x128xf32>
    %25 = tpu.matmul %24, %4, %cst_16 {dimension_numbers = #tpu.dot_dimension_numbers<[1], [0], [0], [1], [0, 0, 1, 1], [], []>} : vector<64x128xbf16>, vector<128x128xbf16>, vector<64x128xf32> -> vector<64x128xf32>
    %26 = vector.broadcast %5 : vector<1x128xf32> to vector<64x128xf32>
    %27 = arith.addf %25, %26 : vector<64x128xf32>
    %c0_17 = arith.constant 0 : index
    %c0_18 = arith.constant 0 : index
    %28 = vector.load %arg6[%c0_17, %c0_18] : memref<64x128xf32, #tpu.memory_space<vmem>>, vector<64x128xf32>
    tpu.vector_store %arg6[%c0_17, %c0_18], %27 {strides = array<i32>} : memref<64x128xf32, #tpu.memory_space<vmem>>, vector<64x128xf32>,
    return
  }
}

</mosaic_0001>

<llo_original>
// kernel: gde_gcn_forward.1
$region0: #{gde_gcn_forward.1}
  #allocation0 [shape = 'u32[]', space=smem, size = 0x4, offset = 0x4, fixed_abs, tag = 'smem constant byte address 0x4 - core index']
  #allocation1 [shape = 'u32[144,128]{1,0:T(1,128)}', space=vmem, size = 0x12000, scoped, tag = 'internal scratch']
  %s0 = inlined_call_operand.vmem [shape: bf16[64,64], index: 0, kind: input, shape index: {}]
  %s1 = inlined_call_operand.vmem [shape: f32[64,128], index: 1, kind: input, shape index: {}]
  %s2 = inlined_call_operand.vmem [shape: bf16[128,128], index: 2, kind: input, shape index: {}]
  %s3 = inlined_call_operand.vmem [shape: f32[1,128], index: 3, kind: input, shape index: {}]
  %s4 = inlined_call_operand.vmem [shape: bf16[128,128], index: 4, kind: input, shape index: {}]
  %s5 = inlined_call_operand.vmem [shape: f32[1,128], index: 5, kind: input, shape index: {}]
  %s6 = inlined_call_operand.vmem [shape: f32[64,128], index: 6, kind: output, shape index: {}]
  %s7 = sld [smem:[#allocation0]]
  $region34: #{gde_gcn_forward.1} parent=0
    _
  %s9 = ssub.s32 1, %s7
  %s10 = scalar_select 0, %s9, %s7
  // Predicated region
  $region2: #{gde_gcn_forward.1} parent=0 // pred_check
    _
  $region3: #{gde_gcn_forward.1} parent=0 // pred_check_branch
    %12 = sbr.rel (0) target = $region5
  $region4: #{gde_gcn_forward.1} parent=0 // pred_region
    _
  $region5: #{gde_gcn_forward.1} parent=0 // pred_fallthru
    _
  // Predicated region
  $region6: #{gde_gcn_forward.1} parent=0 // pred_check
    _
  $region7: #{gde_gcn_forward.1} parent=0 // pred_check_branch
    %14 = sbr.rel (0) target = $region9
  $region8: #{gde_gcn_forward.1} parent=0 // pred_region
    _
  $region9: #{gde_gcn_forward.1} parent=0 // pred_fallthru
    _
  // Predicated region
  $region10: #{gde_gcn_forward.1} parent=0 // pred_check
    _
  $region11: #{gde_gcn_forward.1} parent=0 // pred_check_branch
    %16 = sbr.rel (0) target = $region13
  $region12: #{gde_gcn_forward.1} parent=0 // pred_region
    _
  $region13: #{gde_gcn_forward.1} parent=0 // pred_fallthru
    _
  // Predicated region
  $region14: #{gde_gcn_forward.1} parent=0 // pred_check
    _
  $region15: #{gde_gcn_forward.1} parent=0 // pred_check_branch
    %18 = sbr.rel (0) target = $region17
  $region16: #{gde_gcn_forward.1} parent=0 // pred_region
    _
  $region17: #{gde_gcn_forward.1} parent=0 // pred_fallthru
    _
  // Predicated region
  $region18: #{gde_gcn_forward.1} parent=0 // pred_check
    _
  $region19: #{gde_gcn_forward.1} parent=0 // pred_check_branch
    %20 = sbr.rel (0) target = $region21
  $region20: #{gde_gcn_forward.1} parent=0 // pred_region
    _
  $region21: #{gde_gcn_forward.1} parent=0 // pred_fallthru
    _
  // Predicated region
  $region22: #{gde_gcn_forward.1} parent=0 // pred_check
    _
  $region23: #{gde_gcn_forward.1} parent=0 // pred_check_branch
    %22 = sbr.rel (0) target = $region25
  $region24: #{gde_gcn_forward.1} parent=0 // pred_region
    _
  $region25: #{gde_gcn_forward.1} parent=0 // pred_fallthru
    _
  %v24 = vld [vmem:[%s0] sm:$0xf]
  %v25 = vld [vmem:[%s0 + $0x4] sm:$0xf]
  %v26 = vld [vmem:[%s0 + $0x8] sm:$0xf]
  %v27 = vld [vmem:[%s0 + $0xc] sm:$0xf]
  %v28 = vld [vmem:[%s0 + $0x10] sm:$0xf]
  %v29 = vld [vmem:[%s0 + $0x14] sm:$0xf]
  %v30 = vld [vmem:[%s0 + $0x18] sm:$0xf]
  %v31 = vld [vmem:[%s0 + $0x1c] sm:$0xf]
  %v32 = vld [vmem:[%s1] sm:$0xff]
  %v33 = vld [vmem:[%s1 + $0x8] sm:$0xff]
  %v34 = vld [vmem:[%s1 + $0x10] sm:$0xff]
  %v35 = vld [vmem:[%s1 + $0x18] sm:$0xff]
  %v36 = vld [vmem:[%s1 + $0x20] sm:$0xff]
  %v37 = vld [vmem:[%s1 + $0x28] sm:$0xff]
  %v38 = vld [vmem:[%s1 + $0x30] sm:$0xff]
  %v39 = vld [vmem:[%s1 + $0x38] sm:$0xff]
  %v40 = vld [vmem:[%s2] sm:$0xf]
  %v41 = vld [vmem:[%s2 + $0x4] sm:$0xf]
  %v42 = vld [vmem:[%s2 + $0x8] sm:$0xf]
  %v43 = vld [vmem:[%s2 + $0xc] sm:$0xf]
  %v44 = vld [vmem:[%s2 + $0x10] sm:$0xf]
  %v45 = vld [vmem:[%s2 + $0x14] sm:$0xf]
  %v46 = vld [vmem:[%s2 + $0x18] sm:$0xf]
  %v47 = vld [vmem:[%s2 + $0x1c] sm:$0xf]
  %v48 = vld [vmem:[%s2 + $0x20] sm:$0xf]
  %v49 = vld [vmem:[%s2 + $0x24] sm:$0xf]
  %v50 = vld [vmem:[%s2 + $0x28] sm:$0xf]
  %v51 = vld [vmem:[%s2 + $0x2c] sm:$0xf]
  %v52 = vld [vmem:[%s2 + $0x30] sm:$0xf]
  %v53 = vld [vmem:[%s2 + $0x34] sm:$0xf]
  %v54 = vld [vmem:[%s2 + $0x38] sm:$0xf]
  %v55 = vld [vmem:[%s2 + $0x3c] sm:$0xf]
  %v56 = vld [vmem:[%s3] sm:$0x1]
  %v57 = vld [vmem:[%s4] sm:$0xf]
  %v58 = vld [vmem:[%s4 + $0x4] sm:$0xf]
  %v59 = vld [vmem:[%s4 + $0x8] sm:$0xf]
  %v60 = vld [vmem:[%s4 + $0xc] sm:$0xf]
  %v61 = vld [vmem:[%s4 + $0x10] sm:$0xf]
  %v62 = vld [vmem:[%s4 + $0x14] sm:$0xf]
  %v63 = vld [vmem:[%s4 + $0x18] sm:$0xf]
  %v64 = vld [vmem:[%s4 + $0x1c] sm:$0xf]
  %v65 = vld [vmem:[%s4 + $0x20] sm:$0xf]
  %v66 = vld [vmem:[%s4 + $0x24] sm:$0xf]
  %v67 = vld [vmem:[%s4 + $0x28] sm:$0xf]
  %v68 = vld [vmem:[%s4 + $0x2c] sm:$0xf]
  %v69 = vld [vmem:[%s4 + $0x30] sm:$0xf]
  %v70 = vld [vmem:[%s4 + $0x34] sm:$0xf]
  %v71 = vld [vmem:[%s4 + $0x38] sm:$0xf]
  %v72 = vld [vmem:[%s4 + $0x3c] sm:$0xf]
  %v73 = vld [vmem:[%s5] sm:$0x1]
  %v74 = vpack.c.bf16 %v33, %v32
  %v75 = vpack.c.bf16 %v35, %v34
  %v76 = vpack.c.bf16 %v37, %v36
  %v77 = vpack.c.bf16 %v39, %v38
  %v86 = vunpack.c.l.b16 %v24
  %v87 = vunpack.c.l.b16 %v25
  %v88 = vunpack.c.l.b16 %v26
  %v89 = vunpack.c.l.b16 %v27
  %v90 = vunpack.c.l.b16 %v28
  %v91 = vunpack.c.l.b16 %v29
  %v92 = vunpack.c.l.b16 %v30
  %v93 = vunpack.c.l.b16 %v31
  %v94 = vpack.c.b16 %v87, %v86
  %v95 = vpack.c.b16 %v89, %v88
  %v96 = vpack.c.b16 %v91, %v90
  %v97 = vpack.c.b16 %v93, %v92
  %vm98 = vcmask 523264
  %v100 = vsel %vm98, %v94, 0
  %v103 = vsel %vm98, %v95, 0
  %v106 = vsel %vm98, %v96, 0
  %v109 = vsel %vm98, %v97, 0
  %111 = vmatprep.subr.bf16.mxu0 0
  %112 = vmatpush1.bf16.msra.mxu0 0
  %113 = vmatprep.subr.bf16.mxu0 0
  %114 = vmatpush1.bf16.msra.mxu0 0
  %115 = vmatprep.subr.bf16.mxu0 0
  %116 = vmatpush1.bf16.msra.mxu0 0
  %117 = vmatprep.subr.bf16.mxu0 0
  %118 = vmatpush1.bf16.msra.mxu0 0
  %119 = vmatprep.subr.bf16.mxu0 0
  %120 = vmatpush1.bf16.msra.mxu0 %v77
  %121 = vmatprep.subr.bf16.mxu0 0
  %122 = vmatpush1.bf16.msra.mxu0 %v76
  %123 = vmatprep.subr.bf16.mxu0 0
  %124 = vmatpush1.bf16.msra.mxu0 %v75
  %125 = vmatprep.subr.bf16.mxu0 0
  %126 = vmatpush1.bf16.msra.mxu0 %v74
  %127 = vmatprep.subr.bf16.mxu0 0
  %128 = vmatpush2.bf16.msra.mxu0 0
  %129 = vmatprep.subr.bf16.mxu0 0
  %130 = vmatpush2.bf16.msra.mxu0 0
  %131 = vmatprep.subr.bf16.mxu0 0
  %132 = vmatpush2.bf16.msra.mxu0 0
  %133 = vmatprep.subr.bf16.mxu0 0
  %134 = vmatpush2.bf16.msra.mxu0 0
  %135 = vmatprep.subr.bf16.mxu0 0
  %136 = vmatpush2.bf16.msra.mxu0 0
  %137 = vmatprep.subr.bf16.mxu0 0
  %138 = vmatpush2.bf16.msra.mxu0 0
  %139 = vmatprep.subr.bf16.mxu0 0
  %140 = vmatpush2.bf16.msra.mxu0 0
  %141 = vmatprep.subr.bf16.mxu0 0
  %142 = vmatpush2.bf16.msra.mxu0 0
  %143 = vmatprep.mubr.bf16.mxu0 0
  %144 = vmatmul.mubr.bf16.gmra.mxu0 %v100
  %v145 = vpop.f32.mrf.mxu0
  %v146 = vadd.f32 0.0, %v145
  %v147 = vpop.f32.mrf.mxu0
  %v148 = vpop.f32.mrf.mxu0
  %v149 = vadd.f32 0.0, %v148
  %v150 = vpop.f32.mrf.mxu0
  %151 = vmatprep.mubr.bf16.mxu0 0
  %152 = vmatmul.mubr.bf16.gmra.mxu0 %v103
  %v153 = vpop.f32.mrf.mxu0
  %v154 = vadd.f32 0.0, %v153
  %v155 = vpop.f32.mrf.mxu0
  %v156 = vpop.f32.mrf.mxu0
  %v157 = vadd.f32 0.0, %v156
  %v158 = vpop.f32.mrf.mxu0
  %159 = vmatprep.mubr.bf16.mxu0 0
  %160 = vmatmul.mubr.bf16.gmra.mxu0 %v106
  %v161 = vpop.f32.mrf.mxu0
  %v162 = vadd.f32 0.0, %v161
  %v163 = vpop.f32.mrf.mxu0
  %v164 = vpop.f32.mrf.mxu0
  %v165 = vadd.f32 0.0, %v164
  %v166 = vpop.f32.mrf.mxu0
  %167 = vmatprep.mubr.bf16.mxu0 0
  %168 = vmatmul.mubr.bf16.gmra.mxu0 %v109
  %v169 = vpop.f32.mrf.mxu0
  %v170 = vadd.f32 0.0, %v169
  %v171 = vpop.f32.mrf.mxu0
  %v172 = vpop.f32.mrf.mxu0
  %v173 = vadd.f32 0.0, %v172
  %v174 = vpop.f32.mrf.mxu0
  %175 = vdwg.mxu0
  %v176 = vpack.c.bf16 %v149, %v146
  %v177 = vpack.c.bf16 %v157, %v154
  %v178 = vpack.c.bf16 %v165, %v162
  %v179 = vpack.c.bf16 %v173, %v170
  %v181 = vlaneseq
  %v182 = vshrl.u32 %v181, 7
  %v183 = vsub.s32 0, %v182
  %v184 = vrot.slane %v56, %v183
  %v202 = vunpack.c.l.b16 %v40
  %v203 = vunpack.c.l.b16 %v41
  %v204 = vunpack.c.l.b16 %v42
  %v205 = vunpack.c.l.b16 %v43
  %v206 = vunpack.c.l.b16 %v44
  %v207 = vunpack.c.l.b16 %v45
  %v208 = vunpack.c.l.b16 %v46
  %v209 = vunpack.c.l.b16 %v47
  %v210 = vunpack.c.l.b16 %v48
  %v211 = vunpack.c.l.b16 %v49
  %v212 = vunpack.c.l.b16 %v50
  %v213 = vunpack.c.l.b16 %v51
  %v214 = vunpack.c.l.b16 %v52
  %v215 = vunpack.c.l.b16 %v53
  %v216 = vunpack.c.l.b16 %v54
  %v217 = vunpack.c.l.b16 %v55
  %v218 = vpack.c.b16 %v203, %v202
  %v219 = vpack.c.b16 %v205, %v204
  %v220 = vpack.c.b16 %v207, %v206
  %v221 = vpack.c.b16 %v209, %v208
  %v222 = vpack.c.b16 %v211, %v210
  %v223 = vpack.c.b16 %v213, %v212
  %v224 = vpack.c.b16 %v215, %v214
  %v225 = vpack.c.b16 %v217, %v216
  %234 = vmatprep.subr.bf16.mxu0 0
  %235 = vmatpush1.bf16.msra.mxu0 %v225
  %236 = vmatprep.subr.bf16.mxu0 0
  %237 = vmatpush1.bf16.msra.mxu0 %v224
  %238 = vmatprep.subr.bf16.mxu0 0
  %239 = vmatpush1.bf16.msra.mxu0 %v223
  %240 = vmatprep.subr.bf16.mxu0 0
  %241 = vmatpush1.bf16.msra.mxu0 %v222
  %242 = vmatprep.subr.bf16.mxu0 0
  %243 = vmatpush1.bf16.msra.mxu0 %v221
  %244 = vmatprep.subr.bf16.mxu0 0
  %245 = vmatpush1.bf16.msra.mxu0 %v220
  %246 = vmatprep.subr.bf16.mxu0 0
  %247 = vmatpush1.bf16.msra.mxu0 %v219
  %248 = vmatprep.subr.bf16.mxu0 0
  %249 = vmatpush1.bf16.msra.mxu0 %v218
  %250 = vmatprep.subr.bf16.mxu0 0
  %251 = vmatpush2.bf16.msra.mxu0 0
  %252 = vmatprep.subr.bf16.mxu0 0
  %253 = vmatpush2.bf16.msra.mxu0 0
  %254 = vmatprep.subr.bf16.mxu0 0
  %255 = vmatpush2.bf16.msra.mxu0 0
  %256 = vmatprep.subr.bf16.mxu0 0
  %257 = vmatpush2.bf16.msra.mxu0 0
  %258 = vmatprep.subr.bf16.mxu0 0
  %259 = vmatpush2.bf16.msra.mxu0 0
  %260 = vmatprep.subr.bf16.mxu0 0
  %261 = vmatpush2.bf16.msra.mxu0 0
  %262 = vmatprep.subr.bf16.mxu0 0
  %263 = vmatpush2.bf16.msra.mxu0 0
  %264 = vmatprep.subr.bf16.mxu0 0
  %265 = vmatpush2.bf16.msra.mxu0 0
  %266 = vmatprep.mubr.bf16.mxu0 0
  %267 = vmatmul.mubr.bf16.gmra.mxu0 %v176
  %v268 = vpop.f32.mrf.mxu0
  %v269 = vadd.f32 %v184, %v268
  %v270 = vpop.f32.mrf.mxu0
  %v271 = vpop.f32.mrf.mxu0
  %v272 = vadd.f32 %v184, %v271
  %v273 = vpop.f32.mrf.mxu0
  %274 = vmatprep.mubr.bf16.mxu0 0
  %275 = vmatmul.mubr.bf16.gmra.mxu0 %v177
  %v276 = vpop.f32.mrf.mxu0
  %v277 = vadd.f32 %v184, %v276
  %v278 = vpop.f32.mrf.mxu0
  %v279 = vpop.f32.mrf.mxu0
  %v280 = vadd.f32 %v184, %v279
  %v281 = vpop.f32.mrf.mxu0
  %282 = vmatprep.mubr.bf16.mxu0 0
  %283 = vmatmul.mubr.bf16.gmra.mxu0 %v178
  %v284 = vpop.f32.mrf.mxu0
  %v285 = vadd.f32 %v184, %v284
  %v286 = vpop.f32.mrf.mxu0
  %v287 = vpop.f32.mrf.mxu0
  %v288 = vadd.f32 %v184, %v287
  %v289 = vpop.f32.mrf.mxu0
  %290 = vmatprep.mubr.bf16.mxu0 0
  %291 = vmatmul.mubr.bf16.gmra.mxu0 %v179
  %v292 = vpop.f32.mrf.mxu0
  %v293 = vadd.f32 %v184, %v292
  %v294 = vpop.f32.mrf.mxu0
  %v295 = vpop.f32.mrf.mxu0
  %v296 = vadd.f32 %v184, %v295
  %v297 = vpop.f32.mrf.mxu0
  %298 = vdwg.mxu0
  %v299 = vmax.f32 %v269, 0.0
  %v300 = vmax.f32 %v272, 0.0
  %v301 = vmax.f32 %v277, 0.0
  %v302 = vmax.f32 %v280, 0.0
  %v303 = vmax.f32 %v285, 0.0
  %v304 = vmax.f32 %v288, 0.0
  %v305 = vmax.f32 %v293, 0.0
  %v306 = vmax.f32 %v296, 0.0
  %v307 = vand.u32 2147483647, %v269
  %v308 = vand.u32 2147483647, %v272
  %v309 = vand.u32 2147483647, %v277
  %v310 = vand.u32 2147483647, %v280
  %v311 = vand.u32 2147483647, %v285
  %v312 = vand.u32 2147483647, %v288
  %v313 = vand.u32 2147483647, %v293
  %v314 = vand.u32 2147483647, %v296
  %v315 = vsub.f32 0.0, %v307
  %v316 = vsub.f32 0.0, %v308
  %v317 = vsub.f32 0.0, %v309
  %v318 = vsub.f32 0.0, %v310
  %v319 = vsub.f32 0.0, %v311
  %v320 = vsub.f32 0.0, %v312
  %v321 = vsub.f32 0.0, %v313
  %v322 = vsub.f32 0.0, %v314
  %v323 = vmul.f32 %v315, 1.442695
  %v324 = vpow.pop %v323
  %v325 = vmul.f32 %v316, 1.442695
  %v326 = vpow.pop %v325
  %v327 = vmul.f32 %v317, 1.442695
  %v328 = vpow.pop %v327
  %v329 = vmul.f32 %v318, 1.442695
  %v330 = vpow.pop %v329
  %v331 = vmul.f32 %v319, 1.442695
  %v332 = vpow.pop %v331
  %v333 = vmul.f32 %v320, 1.442695
  %v334 = vpow.pop %v333
  %v335 = vmul.f32 %v321, 1.442695
  %v336 = vpow.pop %v335
  %v337 = vmul.f32 %v322, 1.442695
  %v338 = vpow.pop %v337
  %v339 = vadd.f32 %v324, 1.0
  %v340 = vadd.f32 %v326, 1.0
  %v341 = vadd.f32 %v328, 1.0
  %v342 = vadd.f32 %v330, 1.0
  %v343 = vadd.f32 %v332, 1.0
  %v344 = vadd.f32 %v334, 1.0
  %v345 = vadd.f32 %v336, 1.0
  %v346 = vadd.f32 %v338, 1.0
  %v347 = vlog2.pop %v339
  %v348 = vmul.f32 %v347, 0.6931472
  %v349 = vlog2.pop %v340
  %v350 = vmul.f32 %v349, 0.6931472
  %v351 = vlog2.pop %v341
  %v352 = vmul.f32 %v351, 0.6931472
  %v353 = vlog2.pop %v342
  %v354 = vmul.f32 %v353, 0.6931472
  %v355 = vlog2.pop %v343
  %v356 = vmul.f32 %v355, 0.6931472
  %v357 = vlog2.pop %v344
  %v358 = vmul.f32 %v357, 0.6931472
  %v359 = vlog2.pop %v345
  %v360 = vmul.f32 %v359, 0.6931472
  %v361 = vlog2.pop %v346
  %v362 = vmul.f32 %v361, 0.6931472
  %v363 = vadd.f32 %v299, %v348
  %v364 = vadd.f32 %v300, %v350
  %v365 = vadd.f32 %v301, %v352
  %v366 = vadd.f32 %v302, %v354
  %v367 = vadd.f32 %v303, %v356
  %v368 = vadd.f32 %v304, %v358
  %v369 = vadd.f32 %v305, %v360
  %v370 = vadd.f32 %v306, %v362
  %v371 = vpack.c.bf16 %v364, %v363
  %v372 = vpack.c.bf16 %v366, %v365
  %v373 = vpack.c.bf16 %v368, %v367
  %v374 = vpack.c.bf16 %v370, %v369
  %375 = vmatprep.subr.bf16.mxu0 0
  %376 = vmatpush1.bf16.msra.mxu0 0
  %377 = vmatprep.subr.bf16.mxu0 0
  %378 = vmatpush1.bf16.msra.mxu0 0
  %379 = vmatprep.subr.bf16.mxu0 0
  %380 = vmatpush1.bf16.msra.mxu0 0
  %381 = vmatprep.subr.bf16.mxu0 0
  %382 = vmatpush1.bf16.msra.mxu0 0
  %383 = vmatprep.subr.bf16.mxu0 0
  %384 = vmatpush1.bf16.msra.mxu0 %v374
  %385 = vmatprep.subr.bf16.mxu0 0
  %386 = vmatpush1.bf16.msra.mxu0 %v373
  %387 = vmatprep.subr.bf16.mxu0 0
  %388 = vmatpush1.bf16.msra.mxu0 %v372
  %389 = vmatprep.subr.bf16.mxu0 0
  %390 = vmatpush1.bf16.msra.mxu0 %v371
  %391 = vmatprep.subr.bf16.mxu0 0
  %392 = vmatpush2.bf16.msra.mxu0 0
  %393 = vmatprep.subr.bf16.mxu0 0
  %394 = vmatpush2.bf16.msra.mxu0 0
  %395 = vmatprep.subr.bf16.mxu0 0
  %396 = vmatpush2.bf16.msra.mxu0 0
  %397 = vmatprep.subr.bf16.mxu0 0
  %398 = vmatpush2.bf16.msra.mxu0 0
  %399 = vmatprep.subr.bf16.mxu0 0
  %400 = vmatpush2.bf16.msra.mxu0 0
  %401 = vmatprep.subr.bf16.mxu0 0
  %402 = vmatpush2.bf16.msra.mxu0 0
  %403 = vmatprep.subr.bf16.mxu0 0
  %404 = vmatpush2.bf16.msra.mxu0 0
  %405 = vmatprep.subr.bf16.mxu0 0
  %406 = vmatpush2.bf16.msra.mxu0 0
  %407 = vmatprep.mubr.bf16.mxu0 0
  %408 = vmatmul.mubr.bf16.gmra.mxu0 %v100
  %v409 = vpop.f32.mrf.mxu0
  %v410 = vadd.f32 0.0, %v409
  %v411 = vpop.f32.mrf.mxu0
  %v412 = vpop.f32.mrf.mxu0
  %v413 = vadd.f32 0.0, %v412
  %v414 = vpop.f32.mrf.mxu0
  %415 = vmatprep.mubr.bf16.mxu0 0
  %416 = vmatmul.mubr.bf16.gmra.mxu0 %v103
  %v417 = vpop.f32.mrf.mxu0
  %v418 = vadd.f32 0.0, %v417
  %v419 = vpop.f32.mrf.mxu0
  %v420 = vpop.f32.mrf.mxu0
  %v421 = vadd.f32 0.0, %v420
  %v422 = vpop.f32.mrf.mxu0
  %423 = vmatprep.mubr.bf16.mxu0 0
  %424 = vmatmul.mubr.bf16.gmra.mxu0 %v106
  %v425 = vpop.f32.mrf.mxu0
  %v426 = vadd.f32 0.0, %v425
  %v427 = vpop.f32.mrf.mxu0
  %v428 = vpop.f32.mrf.mxu0
  %v429 = vadd.f32 0.0, %v428
  %v430 = vpop.f32.mrf.mxu0
  %431 = vmatprep.mubr.bf16.mxu0 0
  %432 = vmatmul.mubr.bf16.gmra.mxu0 %v109
  %v433 = vpop.f32.mrf.mxu0
  %v434 = vadd.f32 0.0, %v433
  %v435 = vpop.f32.mrf.mxu0
  %v436 = vpop.f32.mrf.mxu0
  %v437 = vadd.f32 0.0, %v436
  %v438 = vpop.f32.mrf.mxu0
  %439 = vdwg.mxu0
  %v440 = vpack.c.bf16 %v413, %v410
  %v441 = vpack.c.bf16 %v421, %v418
  %v442 = vpack.c.bf16 %v429, %v426
  %v443 = vpack.c.bf16 %v437, %v434
  %v445 = vlaneseq
  %v446 = vshrl.u32 %v445, 7
  %v447 = vsub.s32 0, %v446
  %v448 = vrot.slane %v73, %v447
  %v466 = vunpack.c.l.b16 %v57
  %v467 = vunpack.c.l.b16 %v58
  %v468 = vunpack.c.l.b16 %v59
  %v469 = vunpack.c.l.b16 %v60
  %v470 = vunpack.c.l.b16 %v61
  %v471 = vunpack.c.l.b16 %v62
  %v472 = vunpack.c.l.b16 %v63
  %v473 = vunpack.c.l.b16 %v64
  %v474 = vunpack.c.l.b16 %v65
  %v475 = vunpack.c.l.b16 %v66
  %v476 = vunpack.c.l.b16 %v67
  %v477 = vunpack.c.l.b16 %v68
  %v478 = vunpack.c.l.b16 %v69
  %v479 = vunpack.c.l.b16 %v70
  %v480 = vunpack.c.l.b16 %v71
  %v481 = vunpack.c.l.b16 %v72
  %v482 = vpack.c.b16 %v467, %v466
  %v483 = vpack.c.b16 %v469, %v468
  %v484 = vpack.c.b16 %v471, %v470
  %v485 = vpack.c.b16 %v473, %v472
  %v486 = vpack.c.b16 %v475, %v474
  %v487 = vpack.c.b16 %v477, %v476
  %v488 = vpack.c.b16 %v479, %v478
  %v489 = vpack.c.b16 %v481, %v480
  %498 = vmatprep.subr.bf16.mxu0 0
  %499 = vmatpush1.bf16.msra.mxu0 %v489
  %500 = vmatprep.subr.bf16.mxu0 0
  %501 = vmatpush1.bf16.msra.mxu0 %v488
  %502 = vmatprep.subr.bf16.mxu0 0
  %503 = vmatpush1.bf16.msra.mxu0 %v487
  %504 = vmatprep.subr.bf16.mxu0 0
  %505 = vmatpush1.bf16.msra.mxu0 %v486
  %506 = vmatprep.subr.bf16.mxu0 0
  %507 = vmatpush1.bf16.msra.mxu0 %v485
  %508 = vmatprep.subr.bf16.mxu0 0
  %509 = vmatpush1.bf16.msra.mxu0 %v484
  %510 = vmatprep.subr.bf16.mxu0 0
  %511 = vmatpush1.bf16.msra.mxu0 %v483
  %512 = vmatprep.subr.bf16.mxu0 0
  %513 = vmatpush1.bf16.msra.mxu0 %v482
  %514 = vmatprep.subr.bf16.mxu0 0
  %515 = vmatpush2.bf16.msra.mxu0 0
  %516 = vmatprep.subr.bf16.mxu0 0
  %517 = vmatpush2.bf16.msra.mxu0 0
  %518 = vmatprep.subr.bf16.mxu0 0
  %519 = vmatpush2.bf16.msra.mxu0 0
  %520 = vmatprep.subr.bf16.mxu0 0
  %521 = vmatpush2.bf16.msra.mxu0 0
  %522 = vmatprep.subr.bf16.mxu0 0
  %523 = vmatpush2.bf16.msra.mxu0 0
  %524 = vmatprep.subr.bf16.mxu0 0
  %525 = vmatpush2.bf16.msra.mxu0 0
  %526 = vmatprep.subr.bf16.mxu0 0
  %527 = vmatpush2.bf16.msra.mxu0 0
  %528 = vmatprep.subr.bf16.mxu0 0
  %529 = vmatpush2.bf16.msra.mxu0 0
  %530 = vmatprep.mubr.bf16.mxu0 0
  %531 = vmatmul.mubr.bf16.gmra.mxu0 %v440
  %v532 = vpop.f32.mrf.mxu0
  %v533 = vadd.f32 %v448, %v532
  %v534 = vpop.f32.mrf.mxu0
  %v535 = vpop.f32.mrf.mxu0
  %v536 = vadd.f32 %v448, %v535
  %v537 = vpop.f32.mrf.mxu0
  %538 = vmatprep.mubr.bf16.mxu0 0
  %539 = vmatmul.mubr.bf16.gmra.mxu0 %v441
  %v540 = vpop.f32.mrf.mxu0
  %v541 = vadd.f32 %v448, %v540
  %v542 = vpop.f32.mrf.mxu0
  %v543 = vpop.f32.mrf.mxu0
  %v544 = vadd.f32 %v448, %v543
  %v545 = vpop.f32.mrf.mxu0
  %546 = vmatprep.mubr.bf16.mxu0 0
  %547 = vmatmul.mubr.bf16.gmra.mxu0 %v442
  %v548 = vpop.f32.mrf.mxu0
  %v549 = vadd.f32 %v448, %v548
  %v550 = vpop.f32.mrf.mxu0
  %v551 = vpop.f32.mrf.mxu0
  %v552 = vadd.f32 %v448, %v551
  %v553 = vpop.f32.mrf.mxu0
  %554 = vmatprep.mubr.bf16.mxu0 0
  %555 = vmatmul.mubr.bf16.gmra.mxu0 %v443
  %v556 = vpop.f32.mrf.mxu0
  %v557 = vadd.f32 %v448, %v556
  %v558 = vpop.f32.mrf.mxu0
  %v559 = vpop.f32.mrf.mxu0
  %v560 = vadd.f32 %v448, %v559
  %v561 = vpop.f32.mrf.mxu0
  %562 = vdwg.mxu0
  %563 = vst [vmem:[%s6] sm:$0xff] %v533
  %564 = vst [vmem:[%s6 + $0x8] sm:$0xff] %v536
  %565 = vst [vmem:[%s6 + $0x10] sm:$0xff] %v541
  %566 = vst [vmem:[%s6 + $0x18] sm:$0xff] %v544
  %567 = vst [vmem:[%s6 + $0x20] sm:$0xff] %v549
  %568 = vst [vmem:[%s6 + $0x28] sm:$0xff] %v552
  %569 = vst [vmem:[%s6 + $0x30] sm:$0xff] %v557
  %570 = vst [vmem:[%s6 + $0x38] sm:$0xff] %v560
  // Predicated region
  $region26: #{gde_gcn_forward.1} parent=0 // pred_check
    _
  $region27: #{gde_gcn_forward.1} parent=0 // pred_check_branch
    %572 = sbr.rel (0) target = $region29
  $region28: #{gde_gcn_forward.1} parent=0 // pred_region
    _
  $region29: #{gde_gcn_forward.1} parent=0 // pred_fallthru
    _
  // Predicated region
  $region30: #{gde_gcn_forward.1} parent=0 // pred_check
    _
  $region31: #{gde_gcn_forward.1} parent=0 // pred_check_branch
    %574 = sbr.rel (0) target = $region33
  $region32: #{gde_gcn_forward.1} parent=0 // pred_region
    _
  $region33: #{gde_gcn_forward.1} parent=0 // pred_fallthru
    _

</llo_original>
